<compile_context>
chip_gen: v5e
topology: v5e:2x2
jax: 0.10.0
libtpu: 0.0.40
codegen_flags: <defaults>
</compile_context>

<pallas_src>
import jax
import jax.numpy as jnp
from jax.experimental import pallas as pl
from jax.experimental.pallas import tpu as pltpu


def _bn_kernel_factory(eps, inv_m):
    eps = float(eps)
    inv_m = float(inv_m)

    def bn_kernel(x_ref, w_ref, b_ref, o_ref, stats_ref,
                  sum_ref, sumsq_ref, scale_ref, shift_ref):
        p = pl.program_id(1)          # 0 = stats pass, 1 = normalize pass
        hi = pl.program_id(2)         # spatial tile index
        n_hw = pl.num_programs(2)

        # ---------------- pass 0: accumulate per-channel statistics --------
        @pl.when(jnp.logical_and(p == 0, hi == 0))
        def _init():
            sum_ref[...] = jnp.zeros_like(sum_ref)
            sumsq_ref[...] = jnp.zeros_like(sumsq_ref)

        @pl.when(p == 0)
        def _accumulate():
            x = x_ref[...].astype(jnp.float32)                 # (N, TC, THW)
            sum_ref[...] += jnp.sum(x, axis=(0, 2), keepdims=True)
            sumsq_ref[...] += jnp.sum(x * x, axis=(0, 2), keepdims=True)

        @pl.when(jnp.logical_and(p == 0, hi == n_hw - 1))
        def _finalize_stats():
            mean = sum_ref[...] * inv_m                        # (1, TC, 1)
            # Fused one-pass (biased) variance; clamp guards f32 cancellation.
            var = jnp.maximum(sumsq_ref[...] * inv_m - mean * mean, 0.0)
            inv_std = jax.lax.rsqrt(var + eps)                 # EUP slot
            scale = w_ref[...].astype(jnp.float32) * inv_std
            shift = b_ref[...].astype(jnp.float32) - mean * scale
            scale_ref[...] = scale
            shift_ref[...] = shift
            # Two direct slice stores (no lane-axis concat).
            stats_ref[:, 0:1] = mean[0]                        # (TC, 1)
            stats_ref[:, 1:2] = var[0]

        # ---------------- pass 1: normalize + affine ------------------------
        @pl.when(p == 1)
        def _normalize():
            x = x_ref[...].astype(jnp.float32)
            o_ref[...] = (x * scale_ref[...] + shift_ref[...]).astype(o_ref.dtype)

    return bn_kernel


def _vmem_budget():
    """Generation-aware x-block byte target and explicit scoped-VMEM limit."""
    try:
        cap = int(pltpu.get_tpu_info().vmem_capacity_bytes)
    except Exception:
        cap = 64 << 20  # conservative default (v7x per-TC physical VMEM)
    # Keep double-buffered (x in + y out) blocks well inside the limit:
    # ~4 MiB blocks on 64 MiB parts, ~6 MiB (cap) on 128 MiB parts.
    target_block_bytes = int(max(1 << 20, min(6 << 20, cap // 16)))
    vmem_limit_bytes = int(min(cap * 3 // 4, 96 << 20))
    return target_block_bytes, vmem_limit_bytes


def _pick_tiles(n, c, hw, target_block_bytes):
    """Channel tile TC and spatial tile THW for an (N, TC, THW) f32 block.

    TC: multiple of 8 dividing C (or the full C when C % 8 != 0), capped at
        C/2 when C >= 16 so the parallel axis always has >= 2 steps.
    THW: multiple of 128 dividing HW (lane-dense) or the full HW.
    Prefers a full-HW block (single spatial pass => x read once), then the
    largest block under the byte budget.
    """
    if hw % 128 == 0:
        hw_divs = [d for d in range(128, hw + 1, 128) if hw % d == 0]
    else:
        hw_divs = [hw]  # full-extent lane exemption (masked stores for odd HW)

    if c % 8 != 0:
        tc_divs = [c]   # full-extent sublane exemption (small/odd channel counts)
    else:
        tc_divs = [d for d in range(8, c + 1, 8) if c % d == 0]
        if c >= 16:
            capped = [d for d in tc_divs if d <= c // 2]
            tc_divs = capped if capped else [8]

    candidates = []
    for tc in tc_divs:
        for thw in hw_divs:
            blk = n * tc * thw * 4
            if blk <= target_block_bytes:
                candidates.append((thw == hw, blk, tc, thw))
    if candidates:
        _, _, tc, thw = max(candidates)
    else:
        # Nothing fits the soft budget: smallest legal tiles (still correct;
        # vmem_limit_bytes is raised explicitly in the pallas_call).
        tc, thw = min(tc_divs), min(hw_divs)
    return tc, thw


def batch_norm_forward(x, weight, bias, running_mean, running_var,
                       momentum=0.1, eps=1e-5):
    """Training-mode BatchNorm2d forward matching the PyTorch module.

    x: (N, C, H, W); weight/bias/running_*: (C,).
    Returns (y, new_running_mean, new_running_var).
    """
    n, c, h, w = x.shape
    hw = h * w
    m = n * hw

    # Free reshapes only.
    x3d = x.reshape(n, c, hw)
    w3d = weight.astype(jnp.float32).reshape(1, c, 1)
    b3d = bias.astype(jnp.float32).reshape(1, c, 1)

    target_block_bytes, vmem_limit_bytes = _vmem_budget()
    tc, thw = _pick_tiles(n, c, hw, target_block_bytes)
    grid = (c // tc, 2, hw // thw)

    kernel = _bn_kernel_factory(eps, 1.0 / m)

    y3d, stats = pl.pallas_call(
        kernel,
        out_shape=(
            jax.ShapeDtypeStruct((n, c, hw), x.dtype),
            jax.ShapeDtypeStruct((c, 2), jnp.float32),
        ),
        grid=grid,
        in_specs=[
            pl.BlockSpec((n, tc, thw), lambda ci, p, hi: (0, ci, hi)),
            pl.BlockSpec((1, tc, 1), lambda ci, p, hi: (0, ci, 0)),
            pl.BlockSpec((1, tc, 1), lambda ci, p, hi: (0, ci, 0)),
        ],
        out_specs=(
            # Pass 0 pins the y block index (no writeback while unchanged);
            # pass 1 streams it -> y is written to HBM exactly once.
            pl.BlockSpec((n, tc, thw), lambda ci, p, hi: (0, ci, hi * p)),
            pl.BlockSpec((tc, 2), lambda ci, p, hi: (ci, 0)),
        ),
        scratch_shapes=[
            pltpu.VMEM((1, tc, 1), jnp.float32),   # per-channel sum
            pltpu.VMEM((1, tc, 1), jnp.float32),   # per-channel sum of squares
            pltpu.VMEM((1, tc, 1), jnp.float32),   # folded scale
            pltpu.VMEM((1, tc, 1), jnp.float32),   # folded shift
        ],
        compiler_params=pltpu.CompilerParams(
            dimension_semantics=("parallel", "arbitrary", "arbitrary"),
            vmem_limit_bytes=vmem_limit_bytes,
        ),
    )(x3d, w3d, b3d)

    y = y3d.reshape(n, c, h, w)
    mean = stats[:, 0]
    var = stats[:, 1]

    # Running-stat update (side effect in the PyTorch module; cheap glue).
    eaf = momentum                       # exponential_average_factor
    bessel = m / max(m - 1, 1)           # m == 1 guard (PyTorch would emit inf/NaN)
    new_running_mean = eaf * mean + (1.0 - eaf) * running_mean
    new_running_var = eaf * var * bessel + (1.0 - eaf) * running_var
    return y, new_running_mean, new_running_var


if __name__ == "__main__":
    key = jax.random.PRNGKey(0)
    N, C, H, W = 2, 4, 16, 16

    x = jax.random.normal(key, (N, C, H, W), dtype=jnp.float32)

    # Deterministic parameter init matching the module's __init__.
    weight = jnp.ones((C,), dtype=jnp.float32)
    bias = jnp.zeros((C,), dtype=jnp.float32)
    running_mean = jnp.zeros((C,), dtype=jnp.float32)
    running_var = jnp.ones((C,), dtype=jnp.float32)

    y, rm, rv = batch_norm_forward(x, weight, bias, running_mean, running_var)
    jax.block_until_ready((y, rm, rv))

    # Reference check in plain JAX (same math as torch BN training forward).
    m = N * H * W
    mean_ref = x.mean(axis=(0, 2, 3), keepdims=True)
    var_ref = ((x - mean_ref) ** 2).mean(axis=(0, 2, 3), keepdims=True)
    y_ref = (x - mean_ref) / jnp.sqrt(var_ref + 1e-5)
    y_ref = y_ref * weight[None, :, None, None] + bias[None, :, None, None]
    assert jnp.allclose(y, y_ref, atol=1e-4, rtol=1e-4)

    rm_ref = 0.1 * mean_ref.reshape(C) + 0.9 * running_mean
    rv_ref = 0.1 * var_ref.reshape(C) * m / (m - 1) + 0.9 * running_var
    assert jnp.allclose(rm, rm_ref, atol=1e-5, rtol=1e-5)
    assert jnp.allclose(rv, rv_ref, atol=1e-5, rtol=1e-5)

    # TODO(synk): eval-mode (running-stats) normalization branch is not
    # implemented as a kernel; only the training-mode forward is covered.
    print("KERNEL_OK")
</pallas_src>

<mosaic_0001>
module attributes {stable_mosaic.version = 11 : i64} {
  func.func @bn_kernel(%arg0: i32, %arg1: i32, %arg2: i32, %arg3: memref<2x4x256xf32, #tpu.memory_space<vmem>>, %arg4: memref<1x4x1xf32, #tpu.memory_space<vmem>>, %arg5: memref<1x4x1xf32, #tpu.memory_space<vmem>>, %arg6: memref<2x4x256xf32, #tpu.memory_space<vmem>>, %arg7: memref<4x2xf32, #tpu.memory_space<vmem>>, %arg8: memref<1x4x1xf32, #tpu.memory_space<vmem>>, %arg9: memref<1x4x1xf32, #tpu.memory_space<vmem>>, %arg10: memref<1x4x1xf32, #tpu.memory_space<vmem>>, %arg11: memref<1x4x1xf32, #tpu.memory_space<vmem>>) attributes {dimension_semantics = [#tpu.dimension_semantics<parallel>, #tpu.dimension_semantics<arbitrary>, #tpu.dimension_semantics<arbitrary>], iteration_bounds = array<i64: 1, 2, 1>, scalar_prefetch = 0 : i64, scratch_operands = 4 : i64, tpu.core_type = #tpu.core_type<tc>, window_params = [{transform_indices = @transform_0, window_bounds = array<i64: 2, 4, 256>}, {transform_indices = @transform_1, window_bounds = array<i64: 1, 4, 1>}, {transform_indices = @transform_2, window_bounds = array<i64: 1, 4, 1>}, {transform_indices = @transform_3, window_bounds = array<i64: 2, 4, 256>}, {transform_indices = @transform_4, window_bounds = array<i64: 4, 2>}]} {
    %c0_i32 = arith.constant 0 : i32
    %0 = arith.cmpi eq, %arg1, %c0_i32 : i32
    %c0_i32_0 = arith.constant 0 : i32
    %1 = arith.cmpi eq, %arg2, %c0_i32_0 : i32
    %2 = arith.andi %0, %1 : i1
    %3 = arith.extui %2 : i1 to i32
    %c0_i32_1 = arith.constant 0 : i32
    %4 = arith.cmpi ne, %3, %c0_i32_1 : i32
    scf.if %4 {
      %cst = arith.constant 0.000000e+00 : f32
      %16 = vector.broadcast %cst : f32 to vector<1x4x1xf32>
      %c0 = arith.constant 0 : index
      %c0_8 = arith.constant 0 : index
      %c0_9 = arith.constant 0 : index
      %17 = vector.load %arg8[%c0, %c0_8, %c0_9] : memref<1x4x1xf32, #tpu.memory_space<vmem>>, vector<1x4x1xf32>
      tpu.vector_store %arg8[%c0, %c0_8, %c0_9], %16 {strides = array<i32>} : memref<1x4x1xf32, #tpu.memory_space<vmem>>, vector<1x4x1xf32>,
      %cst_10 = arith.constant 0.000000e+00 : f32
      %18 = vector.broadcast %cst_10 : f32 to vector<1x4x1xf32>
      %c0_11 = arith.constant 0 : index
      %c0_12 = arith.constant 0 : index
      %c0_13 = arith.constant 0 : index
      %19 = vector.load %arg9[%c0_11, %c0_12, %c0_13] : memref<1x4x1xf32, #tpu.memory_space<vmem>>, vector<1x4x1xf32>
      tpu.vector_store %arg9[%c0_11, %c0_12, %c0_13], %18 {strides = array<i32>} : memref<1x4x1xf32, #tpu.memory_space<vmem>>, vector<1x4x1xf32>,
    } else {
    }
    %c0_i32_2 = arith.constant 0 : i32
    %5 = arith.cmpi eq, %arg1, %c0_i32_2 : i32
    %6 = arith.extui %5 : i1 to i32
    %c0_i32_3 = arith.constant 0 : i32
    %7 = arith.cmpi ne, %6, %c0_i32_3 : i32
    scf.if %7 {
      %c0 = arith.constant 0 : index
      %c0_8 = arith.constant 0 : index
      %c0_9 = arith.constant 0 : index
      %16 = vector.load %arg3[%c0, %c0_8, %c0_9] : memref<2x4x256xf32, #tpu.memory_space<vmem>>, vector<2x4x256xf32>
      %c0_10 = arith.constant 0 : index
      %c0_11 = arith.constant 0 : index
      %c0_12 = arith.constant 0 : index
      %17 = vector.load %arg8[%c0_10, %c0_11, %c0_12] : memref<1x4x1xf32, #tpu.memory_space<vmem>>, vector<1x4x1xf32>
      %cst = arith.constant dense<0.000000e+00> : vector<4xf32>
      %18 = vector.multi_reduction <add>, %16, %cst [0, 2] : vector<2x4x256xf32> to vector<4xf32>
      %19 = vector.shape_cast %18 : vector<4xf32> to vector<1x4x1xf32>
      %20 = arith.addf %17, %19 : vector<1x4x1xf32>
      %c0_13 = arith.constant 0 : index
      %c0_14 = arith.constant 0 : index
      %c0_15 = arith.constant 0 : index
      %21 = vector.load %arg8[%c0_13, %c0_14, %c0_15] : memref<1x4x1xf32, #tpu.memory_space<vmem>>, vector<1x4x1xf32>
      tpu.vector_store %arg8[%c0_13, %c0_14, %c0_15], %20 {strides = array<i32>} : memref<1x4x1xf32, #tpu.memory_space<vmem>>, vector<1x4x1xf32>,
      %c0_16 = arith.constant 0 : index
      %c0_17 = arith.constant 0 : index
      %c0_18 = arith.constant 0 : index
      %22 = vector.load %arg9[%c0_16, %c0_17, %c0_18] : memref<1x4x1xf32, #tpu.memory_space<vmem>>, vector<1x4x1xf32>
      %23 = arith.mulf %16, %16 : vector<2x4x256xf32>
      %cst_19 = arith.constant dense<0.000000e+00> : vector<4xf32>
      %24 = vector.multi_reduction <add>, %23, %cst_19 [0, 2] : vector<2x4x256xf32> to vector<4xf32>
      %25 = vector.shape_cast %24 : vector<4xf32> to vector<1x4x1xf32>
      %26 = arith.addf %22, %25 : vector<1x4x1xf32>
      %c0_20 = arith.constant 0 : index
      %c0_21 = arith.constant 0 : index
      %c0_22 = arith.constant 0 : index
      %27 = vector.load %arg9[%c0_20, %c0_21, %c0_22] : memref<1x4x1xf32, #tpu.memory_space<vmem>>, vector<1x4x1xf32>
      tpu.vector_store %arg9[%c0_20, %c0_21, %c0_22], %26 {strides = array<i32>} : memref<1x4x1xf32, #tpu.memory_space<vmem>>, vector<1x4x1xf32>,
    } else {
    }
    %c0_i32_4 = arith.constant 0 : i32
    %8 = arith.cmpi eq, %arg1, %c0_i32_4 : i32
    %c0_i32_5 = arith.constant 0 : i32
    %9 = arith.cmpi eq, %arg2, %c0_i32_5 : i32
    %10 = arith.andi %8, %9 : i1
    %11 = arith.extui %10 : i1 to i32
    %c0_i32_6 = arith.constant 0 : i32
    %12 = arith.cmpi ne, %11, %c0_i32_6 : i32
    scf.if %12 {
      %c0 = arith.constant 0 : index
      %c0_8 = arith.constant 0 : index
      %c0_9 = arith.constant 0 : index
      %16 = vector.load %arg8[%c0, %c0_8, %c0_9] : memref<1x4x1xf32, #tpu.memory_space<vmem>>, vector<1x4x1xf32>
      %cst = arith.constant 0.001953125 : f32
      %17 = vector.broadcast %cst : f32 to vector<1x4x1xf32>
      %18 = arith.mulf %16, %17 : vector<1x4x1xf32>
      %c0_10 = arith.constant 0 : index
      %c0_11 = arith.constant 0 : index
      %c0_12 = arith.constant 0 : index
      %19 = vector.load %arg9[%c0_10, %c0_11, %c0_12] : memref<1x4x1xf32, #tpu.memory_space<vmem>>, vector<1x4x1xf32>
      %cst_13 = arith.constant 0.001953125 : f32
      %20 = vector.broadcast %cst_13 : f32 to vector<1x4x1xf32>
      %21 = arith.mulf %19, %20 : vector<1x4x1xf32>
      %22 = arith.mulf %18, %18 : vector<1x4x1xf32>
      %23 = arith.subf %21, %22 : vector<1x4x1xf32>
      %cst_14 = arith.constant 0.000000e+00 : f32
      %24 = vector.broadcast %cst_14 : f32 to vector<1x4x1xf32>
      %25 = arith.maximumf %23, %24 : vector<1x4x1xf32>
      %cst_15 = arith.constant 9.99999974E-6 : f32
      %26 = vector.broadcast %cst_15 : f32 to vector<1x4x1xf32>
      %27 = arith.addf %25, %26 : vector<1x4x1xf32>
      %28 = math.rsqrt %27 : vector<1x4x1xf32>
      %c0_16 = arith.constant 0 : index
      %c0_17 = arith.constant 0 : index
      %c0_18 = arith.constant 0 : index
      %29 = vector.load %arg4[%c0_16, %c0_17, %c0_18] : memref<1x4x1xf32, #tpu.memory_space<vmem>>, vector<1x4x1xf32>
      %30 = arith.mulf %29, %28 : vector<1x4x1xf32>
      %c0_19 = arith.constant 0 : index
      %c0_20 = arith.constant 0 : index
      %c0_21 = arith.constant 0 : index
      %31 = vector.load %arg5[%c0_19, %c0_20, %c0_21] : memref<1x4x1xf32, #tpu.memory_space<vmem>>, vector<1x4x1xf32>
      %32 = arith.mulf %18, %30 : vector<1x4x1xf32>
      %33 = arith.subf %31, %32 : vector<1x4x1xf32>
      %c0_22 = arith.constant 0 : index
      %c0_23 = arith.constant 0 : index
      %c0_24 = arith.constant 0 : index
      %34 = vector.load %arg10[%c0_22, %c0_23, %c0_24] : memref<1x4x1xf32, #tpu.memory_space<vmem>>, vector<1x4x1xf32>
      tpu.vector_store %arg10[%c0_22, %c0_23, %c0_24], %30 {strides = array<i32>} : memref<1x4x1xf32, #tpu.memory_space<vmem>>, vector<1x4x1xf32>,
      %c0_25 = arith.constant 0 : index
      %c0_26 = arith.constant 0 : index
      %c0_27 = arith.constant 0 : index
      %35 = vector.load %arg11[%c0_25, %c0_26, %c0_27] : memref<1x4x1xf32, #tpu.memory_space<vmem>>, vector<1x4x1xf32>
      tpu.vector_store %arg11[%c0_25, %c0_26, %c0_27], %33 {strides = array<i32>} : memref<1x4x1xf32, #tpu.memory_space<vmem>>, vector<1x4x1xf32>,
      %36 = vector.shape_cast %18 : vector<1x4x1xf32> to vector<4x1xf32>
      %c0_28 = arith.constant 0 : index
      %c0_29 = arith.constant 0 : index
      %37 = vector.load %arg7[%c0_28, %c0_29] : memref<4x2xf32, #tpu.memory_space<vmem>>, vector<4x1xf32>
      tpu.vector_store %arg7[%c0_28, %c0_29], %36 {strides = array<i32>} : memref<4x2xf32, #tpu.memory_space<vmem>>, vector<4x1xf32>,
      %38 = vector.shape_cast %25 : vector<1x4x1xf32> to vector<4x1xf32>
      %c0_30 = arith.constant 0 : index
      %c1 = arith.constant 1 : index
      %39 = vector.load %arg7[%c0_30, %c1] : memref<4x2xf32, #tpu.memory_space<vmem>>, vector<4x1xf32>
      tpu.vector_store %arg7[%c0_30, %c1], %38 {strides = array<i32>} : memref<4x2xf32, #tpu.memory_space<vmem>>, vector<4x1xf32>,
    } else {
    }
    %c1_i32 = arith.constant 1 : i32
    %13 = arith.cmpi eq, %arg1, %c1_i32 : i32
    %14 = arith.extui %13 : i1 to i32
    %c0_i32_7 = arith.constant 0 : i32
    %15 = arith.cmpi ne, %14, %c0_i32_7 : i32
    scf.if %15 {
      %c0 = arith.constant 0 : index
      %c0_8 = arith.constant 0 : index
      %c0_9 = arith.constant 0 : index
      %16 = vector.load %arg3[%c0, %c0_8, %c0_9] : memref<2x4x256xf32, #tpu.memory_space<vmem>>, vector<2x4x256xf32>
      %c0_10 = arith.constant 0 : index
      %c0_11 = arith.constant 0 : index
      %c0_12 = arith.constant 0 : index
      %17 = vector.load %arg10[%c0_10, %c0_11, %c0_12] : memref<1x4x1xf32, #tpu.memory_space<vmem>>, vector<1x4x1xf32>
      %18 = vector.broadcast %17 : vector<1x4x1xf32> to vector<2x4x256xf32>
      %19 = arith.mulf %16, %18 : vector<2x4x256xf32>
      %c0_13 = arith.constant 0 : index
      %c0_14 = arith.constant 0 : index
      %c0_15 = arith.constant 0 : index
      %20 = vector.load %arg11[%c0_13, %c0_14, %c0_15] : memref<1x4x1xf32, #tpu.memory_space<vmem>>, vector<1x4x1xf32>
      %21 = vector.broadcast %20 : vector<1x4x1xf32> to vector<2x4x256xf32>
      %22 = arith.addf %19, %21 : vector<2x4x256xf32>
      %c0_16 = arith.constant 0 : index
      %c0_17 = arith.constant 0 : index
      %c0_18 = arith.constant 0 : index
      %23 = vector.load %arg6[%c0_16, %c0_17, %c0_18] : memref<2x4x256xf32, #tpu.memory_space<vmem>>, vector<2x4x256xf32>
      tpu.vector_store %arg6[%c0_16, %c0_17, %c0_18], %22 {strides = array<i32>} : memref<2x4x256xf32, #tpu.memory_space<vmem>>, vector<2x4x256xf32>,
    } else {
    }
    return
  }
  func.func @transform_0(%arg0: i32, %arg1: i32, %arg2: i32) -> (i32, i32, i32) {
    %c0_i32 = arith.constant 0 : i32
    %c0_i32_0 = arith.constant 0 : i32
    return %c0_i32, %arg0, %arg2 : i32, i32, i32
  }
  func.func @transform_1(%arg0: i32, %arg1: i32, %arg2: i32) -> (i32, i32, i32) {
    %c0_i32 = arith.constant 0 : i32
    %c0_i32_0 = arith.constant 0 : i32
    %c0_i32_1 = arith.constant 0 : i32
    return %c0_i32, %arg0, %c0_i32_0 : i32, i32, i32
  }
  func.func @transform_2(%arg0: i32, %arg1: i32, %arg2: i32) -> (i32, i32, i32) {
    %c0_i32 = arith.constant 0 : i32
    %c0_i32_0 = arith.constant 0 : i32
    %c0_i32_1 = arith.constant 0 : i32
    return %c0_i32, %arg0, %c0_i32_0 : i32, i32, i32
  }
  func.func @transform_3(%arg0: i32, %arg1: i32, %arg2: i32) -> (i32, i32, i32) {
    %0 = arith.muli %arg2, %arg1 : i32
    %c0_i32 = arith.constant 0 : i32
    %c0_i32_0 = arith.constant 0 : i32
    return %c0_i32, %arg0, %0 : i32, i32, i32
  }
  func.func @transform_4(%arg0: i32, %arg1: i32, %arg2: i32) -> (i32, i32) {
    %c0_i32 = arith.constant 0 : i32
    %c0_i32_0 = arith.constant 0 : i32
    return %arg0, %c0_i32 : i32, i32
  }
}

</mosaic_0001>

<llo_original>
// kernel: tpu_custom_call.1
$region0: #{tpu_custom_call.1}
  #allocation0 [shape = 'u32[]', space=smem, size = 0x4, offset = 0x4, fixed_abs, tag = 'smem constant byte address 0x4 - core index']
  #allocation1 [shape = 'u32[72,128]{1,0:T(1,128)}', space=vmem, size = 0x9000, scoped, tag = 'internal scratch']
  #allocation2 [shape = 'f32[1,4,1]{2,1,0:T(4,128)}', space=vmem, size = 0x800, scoped, tag = 'scratch operand']
  #allocation3 [shape = 'f32[1,4,1]{2,1,0:T(4,128)}', space=vmem, size = 0x800, scoped, tag = 'scratch operand']
  #allocation4 [shape = 'f32[1,4,1]{2,1,0:T(4,128)}', space=vmem, size = 0x800, scoped, tag = 'scratch operand']
  #allocation5 [shape = 'f32[1,4,1]{2,1,0:T(4,128)}', space=vmem, size = 0x800, scoped, tag = 'scratch operand']
  %s0 = inlined_call_operand.hbm [shape: f32[2,4,256], index: 0, kind: input, shape index: {}]
  %s1 = inlined_call_operand.vmem [shape: f32[1,4,1], index: 1, kind: input, shape index: {}]
  %s2 = inlined_call_operand.vmem [shape: f32[1,4,1], index: 2, kind: input, shape index: {}]
  %s3 = inlined_call_operand.hbm [shape: f32[2,4,256], index: 3, kind: output, shape index: {0}]
  %s4 = inlined_call_operand.vmem [shape: f32[4,2], index: 4, kind: output, shape index: {1}]
  %5 = xla_tuple %s3, %s4
  %s6 = sld [smem:[#allocation0]]
  $region73: #{tpu_custom_call.1} parent=0
    _
  %s8 = ssub.s32 1, %s6
  %s9 = scalar_select 0, %s8, %s6
  $region1: #{tpu_custom_call.1} parent=0
    #allocation6 [shape = 'u8[8192]{0}', space=vmem, size = 0x2000, scoped, tag = 'input window, operand 0, single buffered']
    #allocation7 [shape = 's32[2]{0}', space=sflag, size = 0x8, scoped, tag = 'scoped memory for tpu_custom_call.1']
    #allocation8 [shape = 's32[2]{0}', space=sflag, size = 0x8, scoped, tag = 'scoped memory for tpu_custom_call.1']
    #allocation9 [shape = 'u8[16384]{0}', space=vmem, size = 0x4000, scoped, tag = 'output window, operand 0']
    %10 = vsyncpa [#allocation7], 0
    %11 = vsyncpa [#allocation8], 0
    %s12 = scalar_lea.sflag [#allocation8], 1
    %13 = vsyncpa %s12, 0
    loop: start=0, step=1, limit=4
    $region2: #{tpu_custom_call.1} parent=1 // loop_pre_header
      _
    $region3: #{tpu_custom_call.1} parent=1 // loop_header
      %s15 = sphi 0, %s19
      %p16 = scmp.ge.s32.totalorder %s15, 4
      %s22 = sphi 0, %s41
      %s23 = sphi 0, %s37
      %s24 = sphi 0, %s33
      %s25 = sphi 0, %s22
      %s26 = sphi 0, %s23
      %s27 = sphi 0, %s24
      %s28 = sphi 0, %s25
      %s29 = sphi 0, %s26
      %s30 = sphi 0, %s27
      %s46 = sphi 0, %s48
      %s49 = sphi 0, %s46
      %s50 = sphi 0, %s49
      %s66 = sphi 0, %s50
      %s72 = sphi 0, %s74
      %s75 = sphi 0, %s72
      %s76 = sphi 0, %s75
      %s92 = sphi 0, %s76
      %s98 = sphi 0, %s100
      %s101 = sphi 0, %s98
      %s102 = sphi 0, %s101
      %s118 = sphi 0, %s102
      %s128 = sphi 0, %s130
      %s131 = sphi 0, %s128
      %s132 = sphi 0, %s131
      %s148 = sphi 0, %s132
      %s154 = sphi 0, %s156
      %s157 = sphi 0, %s154
      %s158 = sphi 0, %s157
      %s174 = sphi 0, %s158
    $region4: #{tpu_custom_call.1} parent=1 // loop_header_branch
      %18 = sbr.rel (%p16) target = $region8
    $region5: #{tpu_custom_call.1} parent=1 // loop_body
      %s20 = ssub.s32 %s15, 1
      %s21 = ssub.s32 %s15, 2
      %s31 = sadd.s32 1, %s24
      %p32 = scmp.ge.s32.totalorder %s31, 1
      %s33 = scalar_select %p32, 0, %s31
      %s34 = sadd.s32 1, %s23
      %s35 = scalar_select %p32, %s34, %s23
      %p36 = scmp.ge.s32.totalorder %s35, 2
      %s37 = scalar_select %p36, 0, %s35
      %s38 = sadd.s32 1, %s22
      %s39 = scalar_select %p36, %s38, %s22
      %p40 = scmp.ge.s32.totalorder %s39, 1
      %s41 = scalar_select %p40, 0, %s39
      %s42 = ssub.s32 %s22, %s41
      %s43 = ssub.s32 %s24, %s33
      %s44 = sor.u32 %s42, %s43
      %p45 = scmp.eq.s32.totalorder %s44, 0
      %s47 = sadd.s32 %s46, 1
      %s48 = scalar_select %p45, %s46, %s47
      %p51 = pneg %p45
      %p52 = scmp.eq.s32.totalorder %s15, 1
      %p53 = por %p51, %p52
      %p54 = scmp.ne.s32.totalorder %s46, %s49
      %p55 = scmp.eq.s32.totalorder %s15, 0
      %p56 = por %p54, %p55
      %p57 = scmp.ne.s32.totalorder %s46, %s49
      %p58 = scmp.eq.s32.totalorder %s20, 1
      %p59 = por %p57, %p58
      %p60 = scmp.ne.s32.totalorder %s49, %s50
      %p61 = scmp.eq.s32.totalorder %s20, 0
      %p62 = por %p60, %p61
      %p63 = scmp.ne.s32.totalorder %s49, %s50
      %p64 = scmp.eq.s32.totalorder %s21, 1
      %p65 = por %p63, %p64
      %p67 = scmp.ne.s32.totalorder %s50, %s66
      %p68 = scmp.eq.s32.totalorder %s21, 0
      %p69 = por %p67, %p68
      %s70 = ssub.s32 %s22, %s41
      %p71 = scmp.eq.s32.totalorder %s70, 0
      %s73 = sadd.s32 %s72, 1
      %s74 = scalar_select %p71, %s72, %s73
      %p77 = pneg %p71
      %p78 = scmp.eq.s32.totalorder %s15, 1
      %p79 = por %p77, %p78
      %p80 = scmp.ne.s32.totalorder %s72, %s75
      %p81 = scmp.eq.s32.totalorder %s15, 0
      %p82 = por %p80, %p81
      %p83 = scmp.ne.s32.totalorder %s72, %s75
      %p84 = scmp.eq.s32.totalorder %s20, 1
      %p85 = por %p83, %p84
      %p86 = scmp.ne.s32.totalorder %s75, %s76
      %p87 = scmp.eq.s32.totalorder %s20, 0
      %p88 = por %p86, %p87
      %p89 = scmp.ne.s32.totalorder %s75, %s76
      %p90 = scmp.eq.s32.totalorder %s21, 1
      %p91 = por %p89, %p90
      %p93 = scmp.ne.s32.totalorder %s76, %s92
      %p94 = scmp.eq.s32.totalorder %s21, 0
      %p95 = por %p93, %p94
      %s96 = ssub.s32 %s22, %s41
      %p97 = scmp.eq.s32.totalorder %s96, 0
      %s99 = sadd.s32 %s98, 1
      %s100 = scalar_select %p97, %s98, %s99
      %p103 = pneg %p97
      %p104 = scmp.eq.s32.totalorder %s15, 1
      %p105 = por %p103, %p104
      %p106 = scmp.ne.s32.totalorder %s98, %s101
      %p107 = scmp.eq.s32.totalorder %s15, 0
      %p108 = por %p106, %p107
      %p109 = scmp.ne.s32.totalorder %s98, %s101
      %p110 = scmp.eq.s32.totalorder %s20, 1
      %p111 = por %p109, %p110
      %p112 = scmp.ne.s32.totalorder %s101, %s102
      %p113 = scmp.eq.s32.totalorder %s20, 0
      %p114 = por %p112, %p113
      %p115 = scmp.ne.s32.totalorder %s101, %s102
      %p116 = scmp.eq.s32.totalorder %s21, 1
      %p117 = por %p115, %p116
      %p119 = scmp.ne.s32.totalorder %s102, %s118
      %p120 = scmp.eq.s32.totalorder %s21, 0
      %p121 = por %p119, %p120
      %s122 = smul.u32 %s24, %s23
      %s123 = smul.u32 %s33, %s37
      %s124 = ssub.s32 %s22, %s41
      %s125 = ssub.s32 %s122, %s123
      %s126 = sor.u32 %s124, %s125
      %p127 = scmp.eq.s32.totalorder %s126, 0
      %s129 = sadd.s32 %s128, 1
      %s130 = scalar_select %p127, %s128, %s129
      %p133 = pneg %p127
      %p134 = scmp.eq.s32.totalorder %s15, 1
      %p135 = por %p133, %p134
      %p136 = scmp.ne.s32.totalorder %s128, %s131
      %p137 = scmp.eq.s32.totalorder %s15, 0
      %p138 = por %p136, %p137
      %p139 = scmp.ne.s32.totalorder %s128, %s131
      %p140 = scmp.eq.s32.totalorder %s20, 1
      %p141 = por %p139, %p140
      %p142 = scmp.ne.s32.totalorder %s131, %s132
      %p143 = scmp.eq.s32.totalorder %s20, 0
      %p144 = por %p142, %p143
      %p145 = scmp.ne.s32.totalorder %s131, %s132
      %p146 = scmp.eq.s32.totalorder %s21, 1
      %p147 = por %p145, %p146
      %p149 = scmp.ne.s32.totalorder %s132, %s148
      %p150 = scmp.eq.s32.totalorder %s21, 0
      %p151 = por %p149, %p150
      %s152 = ssub.s32 %s22, %s41
      %p153 = scmp.eq.s32.totalorder %s152, 0
      %s155 = sadd.s32 %s154, 1
      %s156 = scalar_select %p153, %s154, %s155
      %p159 = pneg %p153
      %p160 = scmp.eq.s32.totalorder %s15, 1
      %p161 = por %p159, %p160
      %p162 = scmp.ne.s32.totalorder %s154, %s157
      %p163 = scmp.eq.s32.totalorder %s15, 0
      %p164 = por %p162, %p163
      %p165 = scmp.ne.s32.totalorder %s154, %s157
      %p166 = scmp.eq.s32.totalorder %s20, 1
      %p167 = por %p165, %p166
      %p168 = scmp.ne.s32.totalorder %s157, %s158
      %p169 = scmp.eq.s32.totalorder %s20, 0
      %p170 = por %p168, %p169
      %p171 = scmp.ne.s32.totalorder %s157, %s158
      %p172 = scmp.eq.s32.totalorder %s21, 1
      %p173 = por %p171, %p172
      %p175 = scmp.ne.s32.totalorder %s158, %s174
      %p176 = scmp.eq.s32.totalorder %s21, 0
      %p177 = por %p175, %p176
      %p178 = scmp.le.s32.totalorder 1, %s15
      %p179 = scmp.lt.s32.totalorder %s15, 3
      %p180 = pnand %p178, %p179
      %p181 = pneg %p180
      // Predicated region
      $region9: #{tpu_custom_call.1} parent=5 // pred_check
        _
      $region10: #{tpu_custom_call.1} parent=5 // pred_check_branch
        %183 = sbr.rel (%p180) target = $region12
      $region11: #{tpu_custom_call.1} parent=5 // pred_region
        %s184 = ssub.s32 %s15, 1
        // Predicated region
        $region13: #{tpu_custom_call.1} parent=11 // pred_check
          %p185 = pneg %p62
        $region14: #{tpu_custom_call.1} parent=11 // pred_check_branch
          %187 = sbr.rel (%p185) target = $region16
        $region15: #{tpu_custom_call.1} parent=11 // pred_region
          %s188 = smul.u32 2, %s27
          %190 = vsyncadd [#allocation7], 0
          %s191 = smul.addr %s25, 2
          %s192 = sadd.s32 %s188, %s191
          %s193 = smul.addr %s192, 4
          %s194 = scalar_lea.hbm %s0, %s193
          %s195 = sshll.u32 %s194, 4
          %s196 = int_to_ptr.hbm [resolvable:$true] %s195
          %s197 = sshll.u32 [#allocation6], 4
          %s198 = int_to_ptr.vmem [resolvable:$true] %s197
          %203 = dma.hbm_to_vmem [thread:$0]  %s196, 256, %s198, [#allocation7], 128, 128, 8
        $region16: #{tpu_custom_call.1} parent=11 // pred_fallthru
          _
        // Predicated region
        $region17: #{tpu_custom_call.1} parent=11 // pred_check
          %p204 = pneg %p88
        $region18: #{tpu_custom_call.1} parent=11 // pred_check_branch
          %206 = sbr.rel (%p204) target = $region20
        $region19: #{tpu_custom_call.1} parent=11 // pred_region
          %p207 = scmp.lt.s32.totalorder %s25, 0
          %s208 = scalar_select %p207, %s25, 0
          %s209 = smul.addr %s208, 4
          %s210 = scalar_lea.vmem %s1, %s209
        $region20: #{tpu_custom_call.1} parent=11 // pred_fallthru
          _
        // Predicated region
        $region21: #{tpu_custom_call.1} parent=11 // pred_check
          %p211 = pneg %p114
        $region22: #{tpu_custom_call.1} parent=11 // pred_check_branch
          %213 = sbr.rel (%p211) target = $region24
        $region23: #{tpu_custom_call.1} parent=11 // pred_region
          %p214 = scmp.lt.s32.totalorder %s25, 0
          %s215 = scalar_select %p214, %s25, 0
          %s216 = smul.addr %s215, 4
          %s217 = scalar_lea.vmem %s2, %s216
        $region24: #{tpu_custom_call.1} parent=11 // pred_fallthru
          _
      $region12: #{tpu_custom_call.1} parent=5 // pred_fallthru
        _
      %p218 = scmp.lt.s32.totalorder %s15, 2
      // Predicated region
      $region25: #{tpu_custom_call.1} parent=5 // pred_check
        %p219 = pneg %p218
      $region26: #{tpu_custom_call.1} parent=5 // pred_check_branch
        %221 = sbr.rel (%p219) target = $region28
      $region27: #{tpu_custom_call.1} parent=5 // pred_region
        _
      $region28: #{tpu_custom_call.1} parent=5 // pred_fallthru
        _
      %p222 = scmp.le.s32.totalorder 1, %s15
      %p223 = scmp.lt.s32.totalorder %s15, 3
      %p224 = pnand %p222, %p223
      %p225 = pneg %p224
      // Predicated region
      $region29: #{tpu_custom_call.1} parent=5 // pred_check
        _
      $region30: #{tpu_custom_call.1} parent=5 // pred_check_branch
        %227 = sbr.rel (%p224) target = $region32
      $region31: #{tpu_custom_call.1} parent=5 // pred_region
        %s228 = ssub.s32 %s15, 1
        // Predicated region
        $region33: #{tpu_custom_call.1} parent=31 // pred_check
          %p229 = pneg %p62
        $region34: #{tpu_custom_call.1} parent=31 // pred_check_branch
          %231 = sbr.rel (%p229) target = $region36
        $region35: #{tpu_custom_call.1} parent=31 // pred_region
          %233 = dma.done [#allocation7], 256
        $region36: #{tpu_custom_call.1} parent=31 // pred_fallthru
          _
        %p234 = pneg %p62
        %p235 = pneg %p59
        %p236 = scmp.lt.s32.totalorder %s25, 0
        %s237 = scalar_select %p236, %s25, 0
        %s238 = smul.addr %s237, 4
        %s239 = scalar_lea.vmem %s1, %s238
        %p240 = pneg %p88
        %p241 = pneg %p85
        %p242 = scmp.lt.s32.totalorder %s25, 0
        %s243 = scalar_select %p242, %s25, 0
        %s244 = smul.addr %s243, 4
        %s245 = scalar_lea.vmem %s2, %s244
        %p246 = pneg %p114
        %p247 = pneg %p111
        %p248 = pneg %p144
        %p249 = pneg %p141
        %s250 = sand.u32 %s131, 1
        %s251 = scalar_lea.sflag [#allocation8], %s250
        %s252 = sand.u32 %s131, 1
        %s253 = smul.addr %s252, 16
        %s254 = scalar_lea.vmem [#allocation9], %s253
        %p255 = pneg %p170
        %p256 = pneg %p167
        %p257 = scmp.lt.s32.totalorder %s25, 0
        %s258 = scalar_select %p257, %s25, 0
        %s259 = smul.addr %s258, 4
        %s260 = scalar_lea.vmem %s4, %s259
        %s261 = smul.u32 2, %s27
        %p262 = scmp.lt.s32.totalorder %s25, 0
        %s263 = scalar_select %p262, %s25, 0
        %s264 = smul.addr %s263, 4
        %s265 = scalar_lea.vmem %s1, %s264
        %p266 = scmp.lt.s32.totalorder %s25, 0
        %s267 = scalar_select %p266, %s25, 0
        %s268 = smul.addr %s267, 4
        %s269 = scalar_lea.vmem %s2, %s268
        %s270 = smul.u32 %s27, %s26
        %s271 = smul.u32 2, %s270
        %p272 = scmp.lt.s32.totalorder %s25, 0
        %s273 = scalar_select %p272, %s25, 0
        %s274 = smul.addr %s273, 4
        %s275 = scalar_lea.vmem %s4, %s274
        %p276 = scmp.eq.s32.totalorder %s26, 0
        %p277 = scmp.eq.s32.totalorder %s27, 0
        %p278 = pnand %p276, %p277
        %p279 = pneg %p278
        // Predicated region
        $region37: #{tpu_custom_call.1} parent=31 // pred_check
          _
        $region38: #{tpu_custom_call.1} parent=31 // pred_check_branch
          %281 = sbr.rel (%p278) target = $region40
        $region39: #{tpu_custom_call.1} parent=31 // pred_region
          %vm282 = vcmask 3072
          %283 = vst.msk [vmem:[#allocation2] sm:$0xf] %vm282, 0.0
          %284 = vst.msk [vmem:[#allocation3] sm:$0xf] %vm282, 0.0
        $region40: #{tpu_custom_call.1} parent=31 // pred_fallthru
          _
        // Predicated region
        $region41: #{tpu_custom_call.1} parent=31 // pred_check
          %p285 = pneg %p276
        $region42: #{tpu_custom_call.1} parent=31 // pred_check_branch
          %287 = sbr.rel (%p285) target = $region44
        $region43: #{tpu_custom_call.1} parent=31 // pred_region
          %v288 = vld [vmem:[#allocation6] sm:$0xff]
          %v289 = vld [vmem:[#allocation6 + $0x8] sm:$0xff]
          %v290 = vld [vmem:[#allocation2] sm:$0xf]
          %293 = vst [vmem:[#allocation1] ss:$2 sm:$0xff] %v288
          %v294 = vld.sshfl [vmem:[#allocation1] sm:$0xff pattern:$0x75316420]
          %v295 = vld.sshfl [vmem:[#allocation1 + $0x8] sm:$0xff pattern:$0x75316420]
          %s296 = scalar_lea.vmem [#allocation1], 16
          %297 = vst [vmem:[%s296] ss:$2 sm:$0xff] %v289
          %v298 = vld.sshfl [vmem:[#allocation1 + $0x10] sm:$0xff pattern:$0x75316420]
          %v299 = vld.sshfl [vmem:[#allocation1 + $0x18] sm:$0xff pattern:$0x75316420]
          %vm304 = vcmask 1043456
          %v305 = vsel %vm304, %v294, 0.0
          %v306 = vsel %vm304, %v295, 0.0
          %v307 = vadd.f32 %v305, %v306
          %v308 = vsel %vm304, %v298, 0.0
          %v309 = vadd.f32 %v307, %v308
          %v310 = vsel %vm304, %v299, 0.0
          %v311 = vadd.f32 %v309, %v310
          %312 = vadd.xlane.f32.xlu0 %v311
          %v313 = vpop.xlane.xlu0 %312
          %v314 = vadd.f32 %v290, %v313
          %vm315 = vcmask 3072
          %316 = vst.msk [vmem:[#allocation2] sm:$0xf] %vm315, %v314
          %v317 = vld [vmem:[#allocation3] sm:$0xf]
          %v318 = vmul.f32 %v288, %v288
          %v319 = vmul.f32 %v289, %v289
          %322 = vst [vmem:[#allocation1] ss:$2 sm:$0xff] %v318
          %v323 = vld.sshfl [vmem:[#allocation1] sm:$0xff pattern:$0x75316420]
          %v324 = vld.sshfl [vmem:[#allocation1 + $0x8] sm:$0xff pattern:$0x75316420]
          %s325 = scalar_lea.vmem [#allocation1], 16
          %326 = vst [vmem:[%s325] ss:$2 sm:$0xff] %v319
          %v327 = vld.sshfl [vmem:[#allocation1 + $0x10] sm:$0xff pattern:$0x75316420]
          %v328 = vld.sshfl [vmem:[#allocation1 + $0x18] sm:$0xff pattern:$0x75316420]
          %v333 = vsel %vm304, %v323, 0.0
          %v334 = vsel %vm304, %v324, 0.0
          %v335 = vadd.f32 %v333, %v334
          %v336 = vsel %vm304, %v327, 0.0
          %v337 = vadd.f32 %v335, %v336
          %v338 = vsel %vm304, %v328, 0.0
          %v339 = vadd.f32 %v337, %v338
          %340 = vadd.xlane.f32.xlu0 %v339
          %v341 = vpop.xlane.xlu0 %340
          %v342 = vadd.f32 %v317, %v341
          %343 = vst.msk [vmem:[#allocation3] sm:$0xf] %vm315, %v342
        $region44: #{tpu_custom_call.1} parent=31 // pred_fallthru
          _
        // Predicated region
        $region45: #{tpu_custom_call.1} parent=31 // pred_check
          _
        $region46: #{tpu_custom_call.1} parent=31 // pred_check_branch
          %345 = sbr.rel (%p278) target = $region48
        $region47: #{tpu_custom_call.1} parent=31 // pred_region
          %v346 = vld [vmem:[#allocation2] sm:$0xf]
          %v347 = vmul.f32 %v346, 0.001953125
          %v348 = vld [vmem:[#allocation3] sm:$0xf]
          %v349 = vmul.f32 %v348, 0.001953125
          %v350 = vmul.f32 %v347, %v347
          %v351 = vsub.f32 %v349, %v350
          %v352 = vmax.f32 %v351, 0.0
          %v353 = vadd.f32 %v352, 1e-05
          %v354 = vrsqrt.pop %v353
          %v355 = vmul.f32 %v354, %v353
          %v356 = vmul.f32 %v355, %v354
          %v357 = vmul.f32 0.5, %v356
          %v358 = vsub.f32 1.5, %v357
          %v359 = vmul.f32 %v354, %v358
          %vm360 = vweird.f32 %v353
          %vm361 = vweird.f32 %v354
          %vm362 = vmor %vm360, %vm361
          %v363 = vsel %vm362, %v354, %v359
          %v364 = vld [vmem:[%s265] sm:$0xf]
          %v365 = vmul.f32 %v364, %v363
          %v366 = vld [vmem:[%s269] sm:$0xf]
          %v367 = vmul.f32 %v347, %v365
          %v368 = vsub.f32 %v366, %v367
          %vm369 = vcmask 3072
          %370 = vst.msk [vmem:[#allocation4] sm:$0xf] %vm369, %v365
          %371 = vst.msk [vmem:[#allocation5] sm:$0xf] %vm369, %v368
          %372 = vst.msk [vmem:[%s275] sm:$0xf] %vm369, %v347
          %374 = vrot.lane.b32.xlu0 %v352, 1
          %v375 = vpop.permute.xlu0 %374
          %vm377 = vcmask 11272
          %378 = vst.msk [vmem:[%s275] sm:$0xf] %vm377, %v375
        $region48: #{tpu_custom_call.1} parent=31 // pred_fallthru
          _
        %p379 = scmp.eq.s32.totalorder %s26, 1
        // Predicated region
        $region49: #{tpu_custom_call.1} parent=31 // pred_check
          %p380 = pneg %p379
        $region50: #{tpu_custom_call.1} parent=31 // pred_check_branch
          %382 = sbr.rel (%p380) target = $region52
        $region51: #{tpu_custom_call.1} parent=31 // pred_region
          %v383 = vld [vmem:[#allocation6] sm:$0xff]
          %v384 = vld [vmem:[#allocation6 + $0x8] sm:$0xff]
          %v385 = vld [vmem:[#allocation4] sm:$0xf]
          %387 = vset.pattern.permute.xlu0 0
          %388 = vperm.xlu0 %387, %v385
          %v389 = vpop.permute.xlu0 %388
          %v391 = vunpack.c.l.s4 839922192
          %v392 = vunpack.c.0.s8 %v391
          %v393 = vperm.slane %v389, %v392
          %v395 = vmul.f32 %v383, %v393
          %v396 = vmul.f32 %v384, %v393
          %v397 = vld [vmem:[#allocation5] sm:$0xf]
          %399 = vset.pattern.permute.xlu0 0
          %400 = vperm.xlu0 %399, %v397
          %v401 = vpop.permute.xlu0 %400
          %v403 = vunpack.c.l.s4 839922192
          %v404 = vunpack.c.0.s8 %v403
          %v405 = vperm.slane %v401, %v404
          %v407 = vadd.f32 %v395, %v405
          %v408 = vadd.f32 %v396, %v405
          %409 = vst [vmem:[%s254] sm:$0xff] %v407
          %410 = vst [vmem:[%s254 + $0x8] sm:$0xff] %v408
        $region52: #{tpu_custom_call.1} parent=31 // pred_fallthru
          _
        %s411 = sand.u32 %s131, 1
        %s412 = scalar_lea.sflag [#allocation8], %s411
        %s413 = sand.u32 %s131, 1
        %s414 = smul.addr %s413, 16
        %s415 = scalar_lea.vmem [#allocation9], %s414
        %p416 = scmp.lt.s32.totalorder %s25, 0
        %s417 = scalar_select %p416, %s25, 0
        %s418 = smul.addr %s417, 4
        %s419 = scalar_lea.vmem %s4, %s418
        // Predicated region
        $region53: #{tpu_custom_call.1} parent=31 // pred_check
          %p420 = pneg %p141
        $region54: #{tpu_custom_call.1} parent=31 // pred_check_branch
          %422 = sbr.rel (%p420) target = $region56
        $region55: #{tpu_custom_call.1} parent=31 // pred_region
          %s423 = smul.u32 %s27, %s26
          %s424 = smul.u32 2, %s423
          %426 = vsyncadd %s412, 0
          %s427 = smul.addr %s25, 2
          %s428 = sadd.s32 %s424, %s427
          %s429 = smul.addr %s428, 4
          %s430 = scalar_lea.hbm %s3, %s429
          %s431 = sshll.u32 %s415, 4
          %s432 = int_to_ptr.vmem [resolvable:$true] %s431
          %s433 = sshll.u32 %s430, 4
          %s434 = int_to_ptr.hbm [resolvable:$true] %s433
          %439 = dma.vmem_to_hbm [thread:$0]  %s432, 256, %s434, %s412, 128, 128, 8
        $region56: #{tpu_custom_call.1} parent=31 // pred_fallthru
          _
        // Predicated region
        $region57: #{tpu_custom_call.1} parent=31 // pred_check
          %p440 = pneg %p167
        $region58: #{tpu_custom_call.1} parent=31 // pred_check_branch
          %442 = sbr.rel (%p440) target = $region60
        $region59: #{tpu_custom_call.1} parent=31 // pred_region
          _
        $region60: #{tpu_custom_call.1} parent=31 // pred_fallthru
          _
        // Predicated region
        $region61: #{tpu_custom_call.1} parent=31 // pred_check
          %p443 = pneg %p167
        $region62: #{tpu_custom_call.1} parent=31 // pred_check_branch
          %445 = sbr.rel (%p443) target = $region64
        $region63: #{tpu_custom_call.1} parent=31 // pred_region
          %p446 = scmp.lt.s32.totalorder %s25, 0
          %s447 = scalar_select %p446, %s25, 0
          %s448 = smul.addr %s447, 4
          %s449 = scalar_lea.vmem %s4, %s448
        $region64: #{tpu_custom_call.1} parent=31 // pred_fallthru
          _
      $region32: #{tpu_custom_call.1} parent=5 // pred_fallthru
        _
      %p450 = scmp.le.s32.totalorder 2, %s15
      // Predicated region
      $region65: #{tpu_custom_call.1} parent=5 // pred_check
        %p451 = pneg %p450
      $region66: #{tpu_custom_call.1} parent=5 // pred_check_branch
        %453 = sbr.rel (%p451) target = $region68
      $region67: #{tpu_custom_call.1} parent=5 // pred_region
        %s454 = ssub.s32 %s15, 2
        // Predicated region
        $region69: #{tpu_custom_call.1} parent=67 // pred_check
          %p455 = pneg %p147
        $region70: #{tpu_custom_call.1} parent=67 // pred_check_branch
          %457 = sbr.rel (%p455) target = $region72
        $region71: #{tpu_custom_call.1} parent=67 // pred_region
          %s458 = sand.u32 %s132, 1
          %s459 = scalar_lea.sflag [#allocation8], %s458
          %s460 = sand.u32 %s132, 1
          %s461 = smul.addr %s460, 16
          %s462 = scalar_lea.vmem [#allocation9], %s461
          %464 = dma.done %s459, 256
        $region72: #{tpu_custom_call.1} parent=67 // pred_fallthru
          _
      $region68: #{tpu_custom_call.1} parent=5 // pred_fallthru
        _
    $region6: #{tpu_custom_call.1} parent=1 // loop_footer
      %s19 = sadd.s32 1, %s15
    $region7: #{tpu_custom_call.1} parent=1 // loop_footer_branch
      %14 = sbr.rel target = $region3
    $region8: #{tpu_custom_call.1} parent=1 // loop_exit
      _
    %465 = vsyncpa [#allocation7], 1
    %s466 = scalar_lea.sflag [#allocation7], 1
    %467 = vsyncpa %s466, 1
    %468 = vsyncpa [#allocation8], 1
    %s469 = scalar_lea.sflag [#allocation8], 1
    %470 = vsyncpa %s469, 1

</llo_original>
